<compile_context>
chip_gen: v7x
topology: tpu7x:2x2x1
jax: 0.10.0
libtpu: 0.0.40
codegen_flags: <defaults>
</compile_context>

<pallas_src>
import functools

import jax
import jax.numpy as jnp
from jax.experimental import pallas as pl
from jax.experimental.pallas import tpu as pltpu


VMEM_BUDGET_BYTES = 32 * 1024 * 1024


# ---------------------------------------------------------------------------
# Plain-JAX glue
# ---------------------------------------------------------------------------
def _nearest_interp_nchw(x, size):
    """PyTorch F.interpolate(..., mode='nearest') for NCHW inputs."""
    n, c, h_in, w_in = x.shape
    h_out, w_out = size
    rows = (jnp.arange(h_out) * h_in) // h_out
    cols = (jnp.arange(w_out) * w_in) // w_out
    return x[:, :, rows, :][:, :, :, cols]


def _fused_need_bytes(nb, C, HW, itemsize):
    fs_block = nb * C * HW * itemsize
    m_block = nb * HW * itemsize
    w_bytes = 2 * C * C * 4 + 2 * C * 4
    # Fs in + out + mask, each double-buffered, plus (double-buffered) weights + slack.
    return 2 * (2 * fs_block + m_block + w_bytes) + (2 << 20)


def _pick_nb(N, C, HW, itemsize, budget):
    best = 1
    for nb in range(1, N + 1):
        if N % nb:
            continue
        if N >= 2 and N // nb < 2:
            continue  # keep >= 2 grid steps so the v7x megacore can split the batch axis
        if _fused_need_bytes(nb, C, HW, itemsize) <= budget:
            best = max(best, nb)
    return best


def _pick_thw(HW, C, itemsize, budget):
    cands = sorted([t for t in range(128, HW + 1, 128) if HW % t == 0], reverse=True)
    if not cands:
        return HW  # HW has no multiple-of-128 divisor -> full row block
    for t in cands:
        if 2 * (2 * C + 1) * t * itemsize + (2 << 20) <= budget:
            return t
    return cands[-1]


# ---------------------------------------------------------------------------
# Kernels
# ---------------------------------------------------------------------------
def _gate(att_f32, w1t_ref, b1_ref, w2t_ref, b2_ref):
    """Sigmoid(W2 @ ReLU(W1 @ att + b1) + b2) on a (rows, C) f32 channel vector."""
    h = jnp.dot(att_f32, w1t_ref[...], preferred_element_type=jnp.float32) + b1_ref[...]
    h = jnp.maximum(h, 0.0)
    z = jnp.dot(h, w2t_ref[...], preferred_element_type=jnp.float32) + b2_ref[...]
    # TODO(synk): Dropout(p=0.5) between conv2 and sigmoid is identity (eval mode).
    return jax.nn.sigmoid(z)


def _attention_fused_kernel(fs_ref, m_ref, w1t_ref, b1_ref, w2t_ref, b2_ref, o_ref,
                            *, inv_hw):
    # fs_ref: (NB, C, HW), m_ref: (NB, 1, HW) -- native dtype.
    # Masked global-average-pool fused onto the MXU: (NB,1,HW) x (NB,C,HW) -> (NB,1,C).
    pooled = jax.lax.dot_general(
        m_ref[...], fs_ref[...],
        dimension_numbers=(((2,), (2,)), ((0,), (0,))),
        preferred_element_type=jnp.float32)
    att = pooled[:, 0, :] * inv_hw                                  # (NB, C) f32
    g = _gate(att, w1t_ref, b1_ref, w2t_ref, b2_ref)                # (NB, C) f32
    # Re-read Fs from VMEM for the scale (keep live ranges small, lane-dense store).
    o_ref[...] = (fs_ref[...] * g[:, :, None].astype(fs_ref.dtype)).astype(o_ref.dtype)


def _masked_pool_kernel(fs_ref, m_ref, att_ref, acc_ref, *, inv_hw):
    # Accumulate sum_HW(mask * Fs) over the HW grid axis; emit mean at the last step.
    j = pl.program_id(1)

    @pl.when(j == 0)
    def _():
        acc_ref[...] = jnp.zeros_like(acc_ref)

    acc_ref[...] += jax.lax.dot_general(
        m_ref[...], fs_ref[...],
        dimension_numbers=(((2,), (2,)), ((0,), (0,))),
        preferred_element_type=jnp.float32)                         # (1, 1, C)

    @pl.when(j == pl.num_programs(1) - 1)
    def _():
        att_ref[...] = acc_ref[...] * inv_hw


def _gate_scale_kernel(att_ref, fs_ref, w1t_ref, b1_ref, w2t_ref, b2_ref, o_ref):
    # Gate recompute per tile is a tiny (1,C)x(C,C) matmul -- negligible vs the HW tile.
    g = _gate(att_ref[...][:, 0, :], w1t_ref, b1_ref, w2t_ref, b2_ref)   # (1, C) f32
    o_ref[...] = (fs_ref[...] * g[:, :, None].astype(fs_ref.dtype)).astype(o_ref.dtype)


# ---------------------------------------------------------------------------
# Wrapper
# ---------------------------------------------------------------------------
@functools.partial(jax.jit, static_argnames=("force_tiled", "tile_hw"))
def attention_forward(Fs, Ys, w1, b1, w2, b2, *, force_tiled=False, tile_hw=None):
    """Fs: (N,C,H,W); Ys: (N,1,h,w) mask; wK: (C,C,1,1); bK: (C,)."""
    N, C, H, W = Fs.shape
    HW = H * W
    itemsize = Fs.dtype.itemsize

    # Nearest-neighbour mask upsampling (cheap gather); keep it in Fs's dtype.
    # TODO(synk): for very small C the full-res mask HBM round trip (~1/(2C) of traffic)
    # could be removed entirely by expanding the low-res mask in-kernel.
    mask = _nearest_interp_nchw(Ys, (H, W)).astype(Fs.dtype)

    fs_flat = Fs.reshape(N, C, HW)                 # native dtype, no up-cast
    m_flat = mask.reshape(N, 1, HW)

    # 1x1 convs == dense layers on the pooled channel vector (weights in f32, tiny).
    w1_t = jnp.transpose(w1.reshape(C, C)).astype(jnp.float32)     # (C_in, C_out)
    w2_t = jnp.transpose(w2.reshape(C, C)).astype(jnp.float32)
    b1_r = b1.reshape(1, C).astype(jnp.float32)
    b2_r = b2.reshape(1, C).astype(jnp.float32)

    use_tiled = (force_tiled or tile_hw is not None
                 or _fused_need_bytes(1, C, HW, itemsize) > VMEM_BUDGET_BYTES)

    if not use_tiled:
        # --- fused single-pass path: whole (NB, C, HW) block per grid step ---
        nb = _pick_nb(N, C, HW, itemsize, VMEM_BUDGET_BYTES)
        out_flat = pl.pallas_call(
            functools.partial(_attention_fused_kernel, inv_hw=1.0 / HW),
            out_shape=jax.ShapeDtypeStruct((N, C, HW), Fs.dtype),
            grid_spec=pltpu.PrefetchScalarGridSpec(
                num_scalar_prefetch=0,
                grid=(N // nb,),
                in_specs=[
                    pl.BlockSpec((nb, C, HW), lambda n: (n, 0, 0)),   # Fs
                    pl.BlockSpec((nb, 1, HW), lambda n: (n, 0, 0)),   # mask
                    pl.BlockSpec((C, C), lambda n: (0, 0)),           # W1^T
                    pl.BlockSpec((1, C), lambda n: (0, 0)),           # b1
                    pl.BlockSpec((C, C), lambda n: (0, 0)),           # W2^T
                    pl.BlockSpec((1, C), lambda n: (0, 0)),           # b2
                ],
                out_specs=pl.BlockSpec((nb, C, HW), lambda n: (n, 0, 0)),
            ),
            compiler_params=pltpu.CompilerParams(
                dimension_semantics=("parallel",),
                vmem_limit_bytes=VMEM_BUDGET_BYTES),
        )(fs_flat, m_flat, w1_t, b1_r, w2_t, b2_r)
        return out_flat.reshape(N, C, H, W)

    # --- two-pass HW-tiled fallback (large C*HW / small-VMEM generations) ---
    thw = tile_hw if tile_hw is not None else _pick_thw(HW, C, itemsize, VMEM_BUDGET_BYTES)
    assert HW % thw == 0 and (thw == HW or thw % 128 == 0), (HW, thw)

    # Pass 1: masked mean pooling, reduction over HW tiles with a VMEM accumulator.
    att = pl.pallas_call(
        functools.partial(_masked_pool_kernel, inv_hw=1.0 / HW),
        out_shape=jax.ShapeDtypeStruct((N, 1, C), jnp.float32),
        grid_spec=pltpu.PrefetchScalarGridSpec(
            num_scalar_prefetch=0,
            grid=(N, HW // thw),
            in_specs=[
                pl.BlockSpec((1, C, thw), lambda i, j: (i, 0, j)),
                pl.BlockSpec((1, 1, thw), lambda i, j: (i, 0, j)),
            ],
            out_specs=pl.BlockSpec((1, 1, C), lambda i, j: (i, 0, 0)),
            scratch_shapes=[pltpu.VMEM((1, 1, C), jnp.float32)],
        ),
        compiler_params=pltpu.CompilerParams(
            dimension_semantics=("parallel", "arbitrary"),
            vmem_limit_bytes=VMEM_BUDGET_BYTES),
    )(fs_flat, m_flat)

    # Pass 2: gate + lane-dense elementwise scale over HW tiles.
    out_flat = pl.pallas_call(
        _gate_scale_kernel,
        out_shape=jax.ShapeDtypeStruct((N, C, HW), Fs.dtype),
        grid_spec=pltpu.PrefetchScalarGridSpec(
            num_scalar_prefetch=0,
            grid=(N, HW // thw),
            in_specs=[
                pl.BlockSpec((1, 1, C), lambda i, j: (i, 0, 0)),      # pooled att
                pl.BlockSpec((1, C, thw), lambda i, j: (i, 0, j)),    # Fs
                pl.BlockSpec((C, C), lambda i, j: (0, 0)),
                pl.BlockSpec((1, C), lambda i, j: (0, 0)),
                pl.BlockSpec((C, C), lambda i, j: (0, 0)),
                pl.BlockSpec((1, C), lambda i, j: (0, 0)),
            ],
            out_specs=pl.BlockSpec((1, C, thw), lambda i, j: (i, 0, j)),
        ),
        compiler_params=pltpu.CompilerParams(
            dimension_semantics=("parallel", "parallel"),
            vmem_limit_bytes=VMEM_BUDGET_BYTES),
    )(att, fs_flat, w1_t, b1_r, w2_t, b2_r)

    return out_flat.reshape(N, C, H, W)


# ---------------------------------------------------------------------------
# Reference & example
# ---------------------------------------------------------------------------
def _reference(Fs, Ys, w1, b1, w2, b2):
    """Pure-JAX forward (ground truth for the Pallas kernels), eval-mode Dropout."""
    N, C, H, W = Fs.shape
    mask = _nearest_interp_nchw(Ys, (H, W)).astype(jnp.float32)
    att = jnp.mean(mask * Fs.astype(jnp.float32), axis=(2, 3))       # (N, C)
    h = jnp.maximum(att @ w1.reshape(C, C).T + b1, 0.0)
    z = h @ w2.reshape(C, C).T + b2
    g = jax.nn.sigmoid(z)
    return (g[:, :, None, None] * Fs.astype(jnp.float32)).astype(Fs.dtype)


def _init_params(key, C):
    """Deterministic synthetic init matching nn.Conv2d(C, C, 1) parameter shapes."""
    k1, k2, k3, k4 = jax.random.split(key, 4)
    bound = 1.0 / jnp.sqrt(jnp.float32(C))            # fan_in = C * 1 * 1
    w1 = jax.random.uniform(k1, (C, C, 1, 1), jnp.float32, -bound, bound)
    b1 = jax.random.uniform(k2, (C,), jnp.float32, -bound, bound)
    w2 = jax.random.uniform(k3, (C, C, 1, 1), jnp.float32, -bound, bound)
    b2 = jax.random.uniform(k4, (C,), jnp.float32, -bound, bound)
    return w1, b1, w2, b2


if __name__ == "__main__":
    key = jax.random.PRNGKey(0)
    k_fs, k_ys, k_par = jax.random.split(key, 3)

    N, C, H, W = 2, 8, 16, 16
    Fs = jax.random.normal(k_fs, (N, C, H, W), jnp.float32)
    # binary support mask at lower resolution (nearest-upsampled to (H, W))
    Ys = (jax.random.uniform(k_ys, (N, 1, 8, 8)) > 0.5).astype(jnp.float32)

    w1, b1, w2, b2 = _init_params(k_par, C)

    # Fused single-pass path (default).
    out = attention_forward(Fs, Ys, w1, b1, w2, b2)
    jax.block_until_ready(out)

    # Exercise the HW-tiled two-pass fallback as well (forced 128-lane tiles).
    out_tiled = attention_forward(Fs, Ys, w1, b1, w2, b2, force_tiled=True, tile_hw=128)
    jax.block_until_ready(out_tiled)

    ref = _reference(Fs, Ys, w1, b1, w2, b2)
    assert out.shape == (N, C, H, W), out.shape
    assert jnp.allclose(out, ref, atol=1e-2, rtol=1e-2)
    assert jnp.allclose(out_tiled, ref, atol=1e-2, rtol=1e-2)
    print("KERNEL_OK")
</pallas_src>

<mosaic_0001>
module attributes {stable_mosaic.version = 11 : i64} {
  func.func @_attention_fused_kernel(%arg0: i32, %arg1: memref<1x8x256xf32, #tpu.memory_space<vmem>>, %arg2: memref<1x1x256xf32, #tpu.memory_space<vmem>>, %arg3: memref<8x8xf32, #tpu.memory_space<vmem>>, %arg4: memref<1x8xf32, #tpu.memory_space<vmem>>, %arg5: memref<8x8xf32, #tpu.memory_space<vmem>>, %arg6: memref<1x8xf32, #tpu.memory_space<vmem>>, %arg7: memref<1x8x256xf32, #tpu.memory_space<vmem>>) attributes {dimension_semantics = [#tpu.dimension_semantics<parallel>], iteration_bounds = array<i64: 2>, scalar_prefetch = 0 : i64, scratch_operands = 0 : i64, tpu.core_type = #tpu.core_type<tc>, window_params = [{transform_indices = @transform_0, window_bounds = array<i64: 1, 8, 256>}, {transform_indices = @transform_1, window_bounds = array<i64: 1, 1, 256>}, {pipeline_mode = #tpu.pipeline_mode<synchronous>, transform_indices = @transform_2, window_bounds = array<i64: 8, 8>}, {pipeline_mode = #tpu.pipeline_mode<synchronous>, transform_indices = @transform_3, window_bounds = array<i64: 1, 8>}, {pipeline_mode = #tpu.pipeline_mode<synchronous>, transform_indices = @transform_4, window_bounds = array<i64: 8, 8>}, {pipeline_mode = #tpu.pipeline_mode<synchronous>, transform_indices = @transform_5, window_bounds = array<i64: 1, 8>}, {transform_indices = @transform_6, window_bounds = array<i64: 1, 8, 256>}]} {
    %c0 = arith.constant 0 : index
    %c0_0 = arith.constant 0 : index
    %c0_1 = arith.constant 0 : index
    %0 = vector.load %arg2[%c0, %c0_0, %c0_1] : memref<1x1x256xf32, #tpu.memory_space<vmem>>, vector<1x1x256xf32>
    %c0_2 = arith.constant 0 : index
    %c0_3 = arith.constant 0 : index
    %c0_4 = arith.constant 0 : index
    %1 = vector.load %arg1[%c0_2, %c0_3, %c0_4] : memref<1x8x256xf32, #tpu.memory_space<vmem>>, vector<1x8x256xf32>
    %cst = arith.constant dense<0.000000e+00> : vector<1x1x8xf32>
    %2 = tpu.matmul %0, %1, %cst {dimension_numbers = #tpu.dot_dimension_numbers<[2], [2], [1], [1], [0, 0, 0, 1, 1, 1], [0], [0]>} : vector<1x1x256xf32>, vector<1x8x256xf32>, vector<1x1x8xf32> -> vector<1x1x8xf32>
    %3 = vector.shape_cast %2 : vector<1x1x8xf32> to vector<1x8xf32>
    %cst_5 = arith.constant 3.906250e-03 : f32
    %4 = vector.broadcast %cst_5 : f32 to vector<1x8xf32>
    %5 = arith.mulf %3, %4 : vector<1x8xf32>
    %c0_6 = arith.constant 0 : index
    %c0_7 = arith.constant 0 : index
    %6 = vector.load %arg3[%c0_6, %c0_7] : memref<8x8xf32, #tpu.memory_space<vmem>>, vector<8x8xf32>
    %cst_8 = arith.constant dense<0.000000e+00> : vector<1x8xf32>
    %7 = tpu.matmul %5, %6, %cst_8 {dimension_numbers = #tpu.dot_dimension_numbers<[1], [0], [0], [1], [0, 0, 1, 1], [], []>} : vector<1x8xf32>, vector<8x8xf32>, vector<1x8xf32> -> vector<1x8xf32>
    %c0_9 = arith.constant 0 : index
    %c0_10 = arith.constant 0 : index
    %8 = vector.load %arg4[%c0_9, %c0_10] : memref<1x8xf32, #tpu.memory_space<vmem>>, vector<1x8xf32>
    %9 = arith.addf %7, %8 : vector<1x8xf32>
    %cst_11 = arith.constant 0.000000e+00 : f32
    %10 = vector.broadcast %cst_11 : f32 to vector<1x8xf32>
    %11 = arith.maximumf %9, %10 : vector<1x8xf32>
    %c0_12 = arith.constant 0 : index
    %c0_13 = arith.constant 0 : index
    %12 = vector.load %arg5[%c0_12, %c0_13] : memref<8x8xf32, #tpu.memory_space<vmem>>, vector<8x8xf32>
    %cst_14 = arith.constant dense<0.000000e+00> : vector<1x8xf32>
    %13 = tpu.matmul %11, %12, %cst_14 {dimension_numbers = #tpu.dot_dimension_numbers<[1], [0], [0], [1], [0, 0, 1, 1], [], []>} : vector<1x8xf32>, vector<8x8xf32>, vector<1x8xf32> -> vector<1x8xf32>
    %c0_15 = arith.constant 0 : index
    %c0_16 = arith.constant 0 : index
    %14 = vector.load %arg6[%c0_15, %c0_16] : memref<1x8xf32, #tpu.memory_space<vmem>>, vector<1x8xf32>
    %15 = arith.addf %13, %14 : vector<1x8xf32>
    %16 = arith.negf %15 : vector<1x8xf32>
    %17 = math.exp %16 : vector<1x8xf32>
    %cst_17 = arith.constant 1.000000e+00 : f32
    %18 = vector.broadcast %cst_17 : f32 to vector<1x8xf32>
    %19 = arith.addf %18, %17 : vector<1x8xf32>
    %20 = arith.divf %18, %19 : vector<1x8xf32>
    %c0_18 = arith.constant 0 : index
    %c0_19 = arith.constant 0 : index
    %c0_20 = arith.constant 0 : index
    %21 = vector.load %arg1[%c0_18, %c0_19, %c0_20] : memref<1x8x256xf32, #tpu.memory_space<vmem>>, vector<1x8x256xf32>
    %22 = vector.shape_cast %20 : vector<1x8xf32> to vector<1x8x1xf32>
    %23 = vector.broadcast %22 : vector<1x8x1xf32> to vector<1x8x256xf32>
    %24 = arith.mulf %21, %23 : vector<1x8x256xf32>
    %c0_21 = arith.constant 0 : index
    %c0_22 = arith.constant 0 : index
    %c0_23 = arith.constant 0 : index
    %25 = vector.load %arg7[%c0_21, %c0_22, %c0_23] : memref<1x8x256xf32, #tpu.memory_space<vmem>>, vector<1x8x256xf32>
    tpu.vector_store %arg7[%c0_21, %c0_22, %c0_23], %24 {strides = array<i32>} : memref<1x8x256xf32, #tpu.memory_space<vmem>>, vector<1x8x256xf32>,
    return
  }
  func.func @transform_0(%arg0: i32) -> (i32, i32, i32) {
    %c0_i32 = arith.constant 0 : i32
    %c0_i32_0 = arith.constant 0 : i32
    %c0_i32_1 = arith.constant 0 : i32
    return %arg0, %c0_i32, %c0_i32_0 : i32, i32, i32
  }
  func.func @transform_1(%arg0: i32) -> (i32, i32, i32) {
    %c0_i32 = arith.constant 0 : i32
    %c0_i32_0 = arith.constant 0 : i32
    %c0_i32_1 = arith.constant 0 : i32
    return %arg0, %c0_i32, %c0_i32_0 : i32, i32, i32
  }
  func.func @transform_2(%arg0: i32) -> (i32, i32) {
    %c0_i32 = arith.constant 0 : i32
    %c0_i32_0 = arith.constant 0 : i32
    %c0_i32_1 = arith.constant 0 : i32
    return %c0_i32, %c0_i32_0 : i32, i32
  }
  func.func @transform_3(%arg0: i32) -> (i32, i32) {
    %c0_i32 = arith.constant 0 : i32
    %c0_i32_0 = arith.constant 0 : i32
    %c0_i32_1 = arith.constant 0 : i32
    return %c0_i32, %c0_i32_0 : i32, i32
  }
  func.func @transform_4(%arg0: i32) -> (i32, i32) {
    %c0_i32 = arith.constant 0 : i32
    %c0_i32_0 = arith.constant 0 : i32
    %c0_i32_1 = arith.constant 0 : i32
    return %c0_i32, %c0_i32_0 : i32, i32
  }
  func.func @transform_5(%arg0: i32) -> (i32, i32) {
    %c0_i32 = arith.constant 0 : i32
    %c0_i32_0 = arith.constant 0 : i32
    %c0_i32_1 = arith.constant 0 : i32
    return %c0_i32, %c0_i32_0 : i32, i32
  }
  func.func @transform_6(%arg0: i32) -> (i32, i32, i32) {
    %c0_i32 = arith.constant 0 : i32
    %c0_i32_0 = arith.constant 0 : i32
    %c0_i32_1 = arith.constant 0 : i32
    return %arg0, %c0_i32, %c0_i32_0 : i32, i32, i32
  }
}

</mosaic_0001>

<llo_original>
// kernel: attention_forward.1
$region0: #{attention_forward.1}
  #allocation0 [shape = 'u32[]', space=smem, size = 0x4, offset = 0x4, fixed_abs, tag = 'smem constant byte address 0x4 - core index']
  #allocation1 [shape = 'u32[144,128]{1,0:T(1,128)}', space=vmem, size = 0x12000, scoped, tag = 'internal scratch']
  %s0 = inlined_call_operand.vmem [shape: f32[2,8,256], index: 0, kind: input, shape index: {}]
  %s1 = inlined_call_operand.vmem [shape: f32[2,1,256], index: 1, kind: input, shape index: {}]
  %s2 = inlined_call_operand.vmem [shape: f32[8,8], index: 2, kind: input, shape index: {}]
  %s3 = inlined_call_operand.vmem [shape: f32[1,8], index: 3, kind: input, shape index: {}]
  %s4 = inlined_call_operand.vmem [shape: f32[8,8], index: 4, kind: input, shape index: {}]
  %s5 = inlined_call_operand.vmem [shape: f32[1,8], index: 5, kind: input, shape index: {}]
  %s6 = inlined_call_operand.vmem [shape: f32[2,8,256], index: 6, kind: output, shape index: {}]
  %s7 = sld [smem:[#allocation0]]
  $region57: #{attention_forward.1} parent=0
    _
  %s9 = ssub.s32 1, %s7
  %s10 = scalar_select 0, %s9, %s7
  loop: start=0, step=1, limit=4
  $region2: #{attention_forward.1} parent=0 // loop_pre_header
    _
  $region3: #{attention_forward.1} parent=0 // loop_header
    %s12 = sphi 0, %s16
    %p13 = scmp.ge.s32.totalorder %s12, 4
    %s22 = sphi 0, %s24
    %s25 = sphi 0, %s22
    %s26 = sphi 0, %s25
    %s42 = sphi 0, %s26
    %s48 = sphi 0, %s50
    %s51 = sphi 0, %s48
    %s52 = sphi 0, %s51
    %s68 = sphi 0, %s52
    %s72 = sphi 0, %s72
    %s74 = sphi 0, %s72
    %s75 = sphi 0, %s74
    %s89 = sphi 0, %s75
    %s93 = sphi 0, %s93
    %s95 = sphi 0, %s93
    %s96 = sphi 0, %s95
    %s110 = sphi 0, %s96
    %s114 = sphi 0, %s114
    %s116 = sphi 0, %s114
    %s117 = sphi 0, %s116
    %s131 = sphi 0, %s117
    %s135 = sphi 0, %s135
    %s137 = sphi 0, %s135
    %s138 = sphi 0, %s137
    %s152 = sphi 0, %s138
    %s158 = sphi 0, %s160
    %s161 = sphi 0, %s158
    %s162 = sphi 0, %s161
    %s178 = sphi 0, %s162
  $region4: #{attention_forward.1} parent=0 // loop_header_branch
    %15 = sbr.rel (%p13) target = $region8
  $region5: #{attention_forward.1} parent=0 // loop_body
    %s17 = ssub.s32 %s12, 1
    %s18 = ssub.s32 %s12, 2
    %s19 = sadd.s32 %s12, 1
    %s20 = ssub.s32 %s12, %s19
    %p21 = scmp.eq.s32.totalorder %s20, 0
    %s23 = sadd.s32 %s22, 1
    %s24 = scalar_select %p21, %s22, %s23
    %p27 = pneg %p21
    %p28 = scmp.eq.s32.totalorder %s12, 1
    %p29 = por %p27, %p28
    %p30 = scmp.ne.s32.totalorder %s22, %s25
    %p31 = scmp.eq.s32.totalorder %s12, 0
    %p32 = por %p30, %p31
    %p33 = scmp.ne.s32.totalorder %s22, %s25
    %p34 = scmp.eq.s32.totalorder %s17, 1
    %p35 = por %p33, %p34
    %p36 = scmp.ne.s32.totalorder %s25, %s26
    %p37 = scmp.eq.s32.totalorder %s17, 0
    %p38 = por %p36, %p37
    %p39 = scmp.ne.s32.totalorder %s25, %s26
    %p40 = scmp.eq.s32.totalorder %s18, 1
    %p41 = por %p39, %p40
    %p43 = scmp.ne.s32.totalorder %s26, %s42
    %p44 = scmp.eq.s32.totalorder %s18, 0
    %p45 = por %p43, %p44
    %s46 = ssub.s32 %s12, %s19
    %p47 = scmp.eq.s32.totalorder %s46, 0
    %s49 = sadd.s32 %s48, 1
    %s50 = scalar_select %p47, %s48, %s49
    %p53 = pneg %p47
    %p54 = scmp.eq.s32.totalorder %s12, 1
    %p55 = por %p53, %p54
    %p56 = scmp.ne.s32.totalorder %s48, %s51
    %p57 = scmp.eq.s32.totalorder %s12, 0
    %p58 = por %p56, %p57
    %p59 = scmp.ne.s32.totalorder %s48, %s51
    %p60 = scmp.eq.s32.totalorder %s17, 1
    %p61 = por %p59, %p60
    %p62 = scmp.ne.s32.totalorder %s51, %s52
    %p63 = scmp.eq.s32.totalorder %s17, 0
    %p64 = por %p62, %p63
    %p65 = scmp.ne.s32.totalorder %s51, %s52
    %p66 = scmp.eq.s32.totalorder %s18, 1
    %p67 = por %p65, %p66
    %p69 = scmp.ne.s32.totalorder %s52, %s68
    %p70 = scmp.eq.s32.totalorder %s18, 0
    %p71 = por %p69, %p70
    %s73 = sadd.s32 %s72, 1
    %p76 = scmp.eq.s32.totalorder %s12, 1
    %p77 = scmp.ne.s32.totalorder %s72, %s74
    %p78 = scmp.eq.s32.totalorder %s12, 0
    %p79 = por %p77, %p78
    %p80 = scmp.ne.s32.totalorder %s72, %s74
    %p81 = scmp.eq.s32.totalorder %s17, 1
    %p82 = por %p80, %p81
    %p83 = scmp.ne.s32.totalorder %s74, %s75
    %p84 = scmp.eq.s32.totalorder %s17, 0
    %p85 = por %p83, %p84
    %p86 = scmp.ne.s32.totalorder %s74, %s75
    %p87 = scmp.eq.s32.totalorder %s18, 1
    %p88 = por %p86, %p87
    %p90 = scmp.ne.s32.totalorder %s75, %s89
    %p91 = scmp.eq.s32.totalorder %s18, 0
    %p92 = por %p90, %p91
    %s94 = sadd.s32 %s93, 1
    %p97 = scmp.eq.s32.totalorder %s12, 1
    %p98 = scmp.ne.s32.totalorder %s93, %s95
    %p99 = scmp.eq.s32.totalorder %s12, 0
    %p100 = por %p98, %p99
    %p101 = scmp.ne.s32.totalorder %s93, %s95
    %p102 = scmp.eq.s32.totalorder %s17, 1
    %p103 = por %p101, %p102
    %p104 = scmp.ne.s32.totalorder %s95, %s96
    %p105 = scmp.eq.s32.totalorder %s17, 0
    %p106 = por %p104, %p105
    %p107 = scmp.ne.s32.totalorder %s95, %s96
    %p108 = scmp.eq.s32.totalorder %s18, 1
    %p109 = por %p107, %p108
    %p111 = scmp.ne.s32.totalorder %s96, %s110
    %p112 = scmp.eq.s32.totalorder %s18, 0
    %p113 = por %p111, %p112
    %s115 = sadd.s32 %s114, 1
    %p118 = scmp.eq.s32.totalorder %s12, 1
    %p119 = scmp.ne.s32.totalorder %s114, %s116
    %p120 = scmp.eq.s32.totalorder %s12, 0
    %p121 = por %p119, %p120
    %p122 = scmp.ne.s32.totalorder %s114, %s116
    %p123 = scmp.eq.s32.totalorder %s17, 1
    %p124 = por %p122, %p123
    %p125 = scmp.ne.s32.totalorder %s116, %s117
    %p126 = scmp.eq.s32.totalorder %s17, 0
    %p127 = por %p125, %p126
    %p128 = scmp.ne.s32.totalorder %s116, %s117
    %p129 = scmp.eq.s32.totalorder %s18, 1
    %p130 = por %p128, %p129
    %p132 = scmp.ne.s32.totalorder %s117, %s131
    %p133 = scmp.eq.s32.totalorder %s18, 0
    %p134 = por %p132, %p133
    %s136 = sadd.s32 %s135, 1
    %p139 = scmp.eq.s32.totalorder %s12, 1
    %p140 = scmp.ne.s32.totalorder %s135, %s137
    %p141 = scmp.eq.s32.totalorder %s12, 0
    %p142 = por %p140, %p141
    %p143 = scmp.ne.s32.totalorder %s135, %s137
    %p144 = scmp.eq.s32.totalorder %s17, 1
    %p145 = por %p143, %p144
    %p146 = scmp.ne.s32.totalorder %s137, %s138
    %p147 = scmp.eq.s32.totalorder %s17, 0
    %p148 = por %p146, %p147
    %p149 = scmp.ne.s32.totalorder %s137, %s138
    %p150 = scmp.eq.s32.totalorder %s18, 1
    %p151 = por %p149, %p150
    %p153 = scmp.ne.s32.totalorder %s138, %s152
    %p154 = scmp.eq.s32.totalorder %s18, 0
    %p155 = por %p153, %p154
    %s156 = ssub.s32 %s12, %s19
    %p157 = scmp.eq.s32.totalorder %s156, 0
    %s159 = sadd.s32 %s158, 1
    %s160 = scalar_select %p157, %s158, %s159
    %p163 = pneg %p157
    %p164 = scmp.eq.s32.totalorder %s12, 1
    %p165 = por %p163, %p164
    %p166 = scmp.ne.s32.totalorder %s158, %s161
    %p167 = scmp.eq.s32.totalorder %s12, 0
    %p168 = por %p166, %p167
    %p169 = scmp.ne.s32.totalorder %s158, %s161
    %p170 = scmp.eq.s32.totalorder %s17, 1
    %p171 = por %p169, %p170
    %p172 = scmp.ne.s32.totalorder %s161, %s162
    %p173 = scmp.eq.s32.totalorder %s17, 0
    %p174 = por %p172, %p173
    %p175 = scmp.ne.s32.totalorder %s161, %s162
    %p176 = scmp.eq.s32.totalorder %s18, 1
    %p177 = por %p175, %p176
    %p179 = scmp.ne.s32.totalorder %s162, %s178
    %p180 = scmp.eq.s32.totalorder %s18, 0
    %p181 = por %p179, %p180
    %p182 = scmp.le.s32.totalorder 1, %s12
    %p183 = scmp.lt.s32.totalorder %s12, 3
    %p184 = pnand %p182, %p183
    %p185 = pneg %p184
    // Predicated region
    $region9: #{attention_forward.1} parent=5 // pred_check
      _
    $region10: #{attention_forward.1} parent=5 // pred_check_branch
      %187 = sbr.rel (%p184) target = $region12
    $region11: #{attention_forward.1} parent=5 // pred_region
      %s188 = ssub.s32 %s12, 1
      // Predicated region
      $region13: #{attention_forward.1} parent=11 // pred_check
        %p189 = pneg %p85
      $region14: #{attention_forward.1} parent=11 // pred_check_branch
        %191 = sbr.rel (%p189) target = $region16
      $region15: #{attention_forward.1} parent=11 // pred_region
        _
      $region16: #{attention_forward.1} parent=11 // pred_fallthru
        _
      // Predicated region
      $region17: #{attention_forward.1} parent=11 // pred_check
        %p192 = pneg %p106
      $region18: #{attention_forward.1} parent=11 // pred_check_branch
        %194 = sbr.rel (%p192) target = $region20
      $region19: #{attention_forward.1} parent=11 // pred_region
        _
      $region20: #{attention_forward.1} parent=11 // pred_fallthru
        _
      // Predicated region
      $region21: #{attention_forward.1} parent=11 // pred_check
        %p195 = pneg %p127
      $region22: #{attention_forward.1} parent=11 // pred_check_branch
        %197 = sbr.rel (%p195) target = $region24
      $region23: #{attention_forward.1} parent=11 // pred_region
        _
      $region24: #{attention_forward.1} parent=11 // pred_fallthru
        _
      // Predicated region
      $region25: #{attention_forward.1} parent=11 // pred_check
        %p198 = pneg %p148
      $region26: #{attention_forward.1} parent=11 // pred_check_branch
        %200 = sbr.rel (%p198) target = $region28
      $region27: #{attention_forward.1} parent=11 // pred_region
        _
      $region28: #{attention_forward.1} parent=11 // pred_fallthru
        _
    $region12: #{attention_forward.1} parent=5 // pred_fallthru
      _
    %p201 = scmp.lt.s32.totalorder %s12, 2
    // Predicated region
    $region29: #{attention_forward.1} parent=5 // pred_check
      %p202 = pneg %p201
    $region30: #{attention_forward.1} parent=5 // pred_check_branch
      %204 = sbr.rel (%p202) target = $region32
    $region31: #{attention_forward.1} parent=5 // pred_region
      // Predicated region
      $region33: #{attention_forward.1} parent=31 // pred_check
        %p205 = pneg %p32
      $region34: #{attention_forward.1} parent=31 // pred_check_branch
        %207 = sbr.rel (%p205) target = $region36
      $region35: #{attention_forward.1} parent=31 // pred_region
        %p208 = scmp.lt.s32.totalorder %s12, 1
        %s209 = scalar_select %p208, %s12, 1
        %s210 = smul.addr %s209, 2
        %s211 = smul.addr %s210, 8
        %s212 = scalar_lea.vmem %s0, %s211
      $region36: #{attention_forward.1} parent=31 // pred_fallthru
        _
      // Predicated region
      $region37: #{attention_forward.1} parent=31 // pred_check
        %p213 = pneg %p58
      $region38: #{attention_forward.1} parent=31 // pred_check_branch
        %215 = sbr.rel (%p213) target = $region40
      $region39: #{attention_forward.1} parent=31 // pred_region
        %p216 = scmp.lt.s32.totalorder %s12, 1
        %s217 = scalar_select %p216, %s12, 1
        %s218 = smul.addr %s217, 2
        %s219 = scalar_lea.vmem %s1, %s218
      $region40: #{attention_forward.1} parent=31 // pred_fallthru
        _
    $region32: #{attention_forward.1} parent=5 // pred_fallthru
      _
    %p220 = scmp.le.s32.totalorder 1, %s12
    %p221 = scmp.lt.s32.totalorder %s12, 3
    %p222 = pnand %p220, %p221
    %p223 = pneg %p222
    // Predicated region
    $region41: #{attention_forward.1} parent=5 // pred_check
      _
    $region42: #{attention_forward.1} parent=5 // pred_check_branch
      %225 = sbr.rel (%p222) target = $region44
    $region43: #{attention_forward.1} parent=5 // pred_region
      %s226 = ssub.s32 %s12, 1
      %p227 = scmp.lt.s32.totalorder %s17, 1
      %s228 = scalar_select %p227, %s17, 1
      %s229 = smul.addr %s228, 2
      %s230 = smul.addr %s229, 8
      %s231 = scalar_lea.vmem %s0, %s230
      %p232 = pneg %p38
      %p233 = pneg %p35
      %p234 = scmp.lt.s32.totalorder %s17, 1
      %s235 = scalar_select %p234, %s17, 1
      %s236 = smul.addr %s235, 2
      %s237 = scalar_lea.vmem %s1, %s236
      %p238 = pneg %p64
      %p239 = pneg %p61
      %p240 = pneg %p85
      %p241 = pneg %p82
      %p242 = pneg %p106
      %p243 = pneg %p103
      %p244 = pneg %p127
      %p245 = pneg %p124
      %p246 = pneg %p148
      %p247 = pneg %p145
      %p248 = pneg %p174
      %p249 = pneg %p171
      %p250 = scmp.lt.s32.totalorder %s17, 1
      %s251 = scalar_select %p250, %s17, 1
      %s252 = smul.addr %s251, 2
      %s253 = smul.addr %s252, 8
      %s254 = scalar_lea.vmem %s6, %s253
      %p255 = scmp.lt.s32.totalorder %s17, 1
      %s256 = scalar_select %p255, %s17, 1
      %s257 = smul.addr %s256, 2
      %s258 = smul.addr %s257, 8
      %s259 = scalar_lea.vmem %s0, %s258
      %p260 = scmp.lt.s32.totalorder %s17, 1
      %s261 = scalar_select %p260, %s17, 1
      %s262 = smul.addr %s261, 2
      %s263 = scalar_lea.vmem %s1, %s262
      %p264 = scmp.lt.s32.totalorder %s17, 1
      %s265 = scalar_select %p264, %s17, 1
      %s266 = smul.addr %s265, 2
      %s267 = smul.addr %s266, 8
      %s268 = scalar_lea.vmem %s6, %s267
      %v269 = vld [vmem:[%s263] sm:$0x3]
      %v270 = vld [vmem:[%s259] sm:$0xff]
      %v271 = vld [vmem:[%s259 + $0x8] sm:$0xff]
      %v273 = vlaneseq
      %v274 = vshrl.u32 %v273, 7
      %v275 = vsub.s32 0, %v274
      %v276 = vrot.slane %v269, %v275
      %v277 = vlaneseq
      %v278 = vshrl.u32 %v277, 7
      %v279 = vsub.s32 1, %v278
      %v280 = vrot.slane %v269, %v279
      %283 = vmatprep.subr.mxu0 %v271
      %284 = vmatpush1.xpose.msra.mxu0 %v270
      %285 = vmatprep.subr.mxu0 0.0
      %286 = vmatpush1.xpose.msra.mxu0 0.0
      %287 = vmatprep.subr.mxu0 0.0
      %288 = vmatpush1.xpose.msra.mxu0 0.0
      %289 = vmatprep.subr.mxu0 0.0
      %290 = vmatpush1.xpose.msra.mxu0 0.0
      %291 = vmatprep.subr.mxu0 0.0
      %292 = vmatpush1.xpose.msra.mxu0 0.0
      %293 = vmatprep.subr.mxu0 0.0
      %294 = vmatpush1.xpose.msra.mxu0 0.0
      %295 = vmatprep.subr.mxu0 0.0
      %296 = vmatpush1.xpose.msra.mxu0 0.0
      %297 = vmatprep.subr.mxu0 0.0
      %298 = vmatpush1.xpose.msra.mxu0 0.0
      %299 = vmatprep.subr.mxu0 0.0
      %300 = vmatpush1.xpose.msra.mxu0 0.0
      %301 = vmatprep.subr.mxu0 0.0
      %302 = vmatpush1.xpose.msra.mxu0 0.0
      %303 = vmatprep.subr.mxu0 0.0
      %304 = vmatpush1.xpose.msra.mxu0 0.0
      %305 = vmatprep.subr.mxu0 0.0
      %306 = vmatpush1.xpose.msra.mxu0 0.0
      %307 = vmatprep.subr.mxu0 0.0
      %308 = vmatpush1.xpose.msra.mxu0 0.0
      %309 = vmatprep.subr.mxu0 0.0
      %310 = vmatpush1.xpose.msra.mxu0 0.0
      %311 = vmatprep.subr.mxu0 0.0
      %312 = vmatpush1.xpose.msra.mxu0 0.0
      %313 = vmatprep.subr.mxu0 0.0
      %314 = vmatpush1.xpose.msra.mxu0 0.0
      %315 = vmatprep.subr.mxu0 0.0
      %316 = vmatpush1.xpose.msra.mxu0 0.0
      %317 = vmatprep.subr.mxu0 0.0
      %318 = vmatpush1.xpose.msra.mxu0 0.0
      %319 = vmatprep.subr.mxu0 0.0
      %320 = vmatpush1.xpose.msra.mxu0 0.0
      %321 = vmatprep.subr.mxu0 0.0
      %322 = vmatpush1.xpose.msra.mxu0 0.0
      %323 = vmatprep.subr.mxu0 0.0
      %324 = vmatpush1.xpose.msra.mxu0 0.0
      %325 = vmatprep.subr.mxu0 0.0
      %326 = vmatpush1.xpose.msra.mxu0 0.0
      %327 = vmatprep.subr.mxu0 0.0
      %328 = vmatpush1.xpose.msra.mxu0 0.0
      %329 = vmatprep.subr.mxu0 0.0
      %330 = vmatpush1.xpose.msra.mxu0 0.0
      %331 = vmatprep.subr.mxu0 0.0
      %332 = vmatpush1.xpose.msra.mxu0 0.0
      %333 = vmatprep.subr.mxu0 0.0
      %334 = vmatpush1.xpose.msra.mxu0 0.0
      %335 = vmatprep.subr.mxu0 0.0
      %336 = vmatpush1.xpose.msra.mxu0 0.0
      %337 = vmatprep.subr.mxu0 0.0
      %338 = vmatpush1.xpose.msra.mxu0 0.0
      %339 = vmatprep.subr.mxu0 0.0
      %340 = vmatpush1.xpose.msra.mxu0 0.0
      %341 = vmatprep.subr.mxu0 0.0
      %342 = vmatpush1.xpose.msra.mxu0 0.0
      %343 = vmatprep.subr.mxu0 0.0
      %344 = vmatpush1.xpose.msra.mxu0 0.0
      %345 = vmatprep.subr.mxu0 0.0
      %346 = vmatpush1.xpose.msra.mxu0 0.0
      %347 = vmatprep.mubr.f32.mxu0 %v280
      %348 = vmatmul.mubr.f32.gmra.mrb[0].mxu0 %v276
      %v349 = vpop.f32.mrb[0].mxu0
      %v350 = vadd.f32 0.0, %v349
      %v351 = vpop.f32.mrb[0].mxu0
      %352 = vdwg.mxu0
      %v353 = vmul.f32 %v350, 0.00390625
      %v354 = vld [vmem:[%s2] sm:$0xff]
      %v355 = vld [vmem:[%s3] sm:$0x1]
      %vm356 = vcmask 64512
      %v358 = vsel %vm356, %v353, 0
      %360 = vmatprep.subr.mxu0 0.0
      %361 = vmatpush1.msra.mxu0 %v354
      %362 = vmatprep.subr.mxu0 0.0
      %363 = vmatpush1.msra.mxu0 0.0
      %364 = vmatprep.subr.mxu0 0.0
      %365 = vmatpush1.msra.mxu0 0.0
      %366 = vmatprep.subr.mxu0 0.0
      %367 = vmatpush1.msra.mxu0 0.0
      %368 = vmatprep.subr.mxu0 0.0
      %369 = vmatpush1.msra.mxu0 0.0
      %370 = vmatprep.subr.mxu0 0.0
      %371 = vmatpush1.msra.mxu0 0.0
      %372 = vmatprep.subr.mxu0 0.0
      %373 = vmatpush1.msra.mxu0 0.0
      %374 = vmatprep.subr.mxu0 0.0
      %375 = vmatpush1.msra.mxu0 0.0
      %376 = vmatprep.subr.mxu0 0.0
      %377 = vmatpush1.msra.mxu0 0.0
      %378 = vmatprep.subr.mxu0 0.0
      %379 = vmatpush1.msra.mxu0 0.0
      %380 = vmatprep.subr.mxu0 0.0
      %381 = vmatpush1.msra.mxu0 0.0
      %382 = vmatprep.subr.mxu0 0.0
      %383 = vmatpush1.msra.mxu0 0.0
      %384 = vmatprep.subr.mxu0 0.0
      %385 = vmatpush1.msra.mxu0 0.0
      %386 = vmatprep.subr.mxu0 0.0
      %387 = vmatpush1.msra.mxu0 0.0
      %388 = vmatprep.subr.mxu0 0.0
      %389 = vmatpush1.msra.mxu0 0.0
      %390 = vmatprep.subr.mxu0 0.0
      %391 = vmatpush1.msra.mxu0 0.0
      %392 = vmatprep.subr.mxu0 0.0
      %393 = vmatpush1.msra.mxu0 0.0
      %394 = vmatprep.subr.mxu0 0.0
      %395 = vmatpush1.msra.mxu0 0.0
      %396 = vmatprep.subr.mxu0 0.0
      %397 = vmatpush1.msra.mxu0 0.0
      %398 = vmatprep.subr.mxu0 0.0
      %399 = vmatpush1.msra.mxu0 0.0
      %400 = vmatprep.subr.mxu0 0.0
      %401 = vmatpush1.msra.mxu0 0.0
      %402 = vmatprep.subr.mxu0 0.0
      %403 = vmatpush1.msra.mxu0 0.0
      %404 = vmatprep.subr.mxu0 0.0
      %405 = vmatpush1.msra.mxu0 0.0
      %406 = vmatprep.subr.mxu0 0.0
      %407 = vmatpush1.msra.mxu0 0.0
      %408 = vmatprep.subr.mxu0 0.0
      %409 = vmatpush1.msra.mxu0 0.0
      %410 = vmatprep.subr.mxu0 0.0
      %411 = vmatpush1.msra.mxu0 0.0
      %412 = vmatprep.subr.mxu0 0.0
      %413 = vmatpush1.msra.mxu0 0.0
      %414 = vmatprep.subr.mxu0 0.0
      %415 = vmatpush1.msra.mxu0 0.0
      %416 = vmatprep.subr.mxu0 0.0
      %417 = vmatpush1.msra.mxu0 0.0
      %418 = vmatprep.subr.mxu0 0.0
      %419 = vmatpush1.msra.mxu0 0.0
      %420 = vmatprep.subr.mxu0 0.0
      %421 = vmatpush1.msra.mxu0 0.0
      %422 = vmatprep.subr.mxu0 0.0
      %423 = vmatpush1.msra.mxu0 0.0
      %424 = vmatprep.mubr.f32.mxu0 0.0
      %425 = vmatmul.mubr.f32.gmra.mrb[0].mxu0 %v358
      %v426 = vpop.f32.mrb[0].mxu0
      %v427 = vadd.f32 %v355, %v426
      %v428 = vpop.f32.mrb[0].mxu0
      %429 = vdwg.mxu0
      %v430 = vmax.f32 %v427, 0.0
      %v431 = vld [vmem:[%s4] sm:$0xff]
      %v432 = vld [vmem:[%s5] sm:$0x1]
      %v434 = vsel %vm356, %v430, 0
      %436 = vmatprep.subr.mxu0 0.0
      %437 = vmatpush1.msra.mxu0 %v431
      %438 = vmatprep.subr.mxu0 0.0
      %439 = vmatpush1.msra.mxu0 0.0
      %440 = vmatprep.subr.mxu0 0.0
      %441 = vmatpush1.msra.mxu0 0.0
      %442 = vmatprep.subr.mxu0 0.0
      %443 = vmatpush1.msra.mxu0 0.0
      %444 = vmatprep.subr.mxu0 0.0
      %445 = vmatpush1.msra.mxu0 0.0
      %446 = vmatprep.subr.mxu0 0.0
      %447 = vmatpush1.msra.mxu0 0.0
      %448 = vmatprep.subr.mxu0 0.0
      %449 = vmatpush1.msra.mxu0 0.0
      %450 = vmatprep.subr.mxu0 0.0
      %451 = vmatpush1.msra.mxu0 0.0
      %452 = vmatprep.subr.mxu0 0.0
      %453 = vmatpush1.msra.mxu0 0.0
      %454 = vmatprep.subr.mxu0 0.0
      %455 = vmatpush1.msra.mxu0 0.0
      %456 = vmatprep.subr.mxu0 0.0
      %457 = vmatpush1.msra.mxu0 0.0
      %458 = vmatprep.subr.mxu0 0.0
      %459 = vmatpush1.msra.mxu0 0.0
      %460 = vmatprep.subr.mxu0 0.0
      %461 = vmatpush1.msra.mxu0 0.0
      %462 = vmatprep.subr.mxu0 0.0
      %463 = vmatpush1.msra.mxu0 0.0
      %464 = vmatprep.subr.mxu0 0.0
      %465 = vmatpush1.msra.mxu0 0.0
      %466 = vmatprep.subr.mxu0 0.0
      %467 = vmatpush1.msra.mxu0 0.0
      %468 = vmatprep.subr.mxu0 0.0
      %469 = vmatpush1.msra.mxu0 0.0
      %470 = vmatprep.subr.mxu0 0.0
      %471 = vmatpush1.msra.mxu0 0.0
      %472 = vmatprep.subr.mxu0 0.0
      %473 = vmatpush1.msra.mxu0 0.0
      %474 = vmatprep.subr.mxu0 0.0
      %475 = vmatpush1.msra.mxu0 0.0
      %476 = vmatprep.subr.mxu0 0.0
      %477 = vmatpush1.msra.mxu0 0.0
      %478 = vmatprep.subr.mxu0 0.0
      %479 = vmatpush1.msra.mxu0 0.0
      %480 = vmatprep.subr.mxu0 0.0
      %481 = vmatpush1.msra.mxu0 0.0
      %482 = vmatprep.subr.mxu0 0.0
      %483 = vmatpush1.msra.mxu0 0.0
      %484 = vmatprep.subr.mxu0 0.0
      %485 = vmatpush1.msra.mxu0 0.0
      %486 = vmatprep.subr.mxu0 0.0
      %487 = vmatpush1.msra.mxu0 0.0
      %488 = vmatprep.subr.mxu0 0.0
      %489 = vmatpush1.msra.mxu0 0.0
      %490 = vmatprep.subr.mxu0 0.0
      %491 = vmatpush1.msra.mxu0 0.0
      %492 = vmatprep.subr.mxu0 0.0
      %493 = vmatpush1.msra.mxu0 0.0
      %494 = vmatprep.subr.mxu0 0.0
      %495 = vmatpush1.msra.mxu0 0.0
      %496 = vmatprep.subr.mxu0 0.0
      %497 = vmatpush1.msra.mxu0 0.0
      %498 = vmatprep.subr.mxu0 0.0
      %499 = vmatpush1.msra.mxu0 0.0
      %500 = vmatprep.mubr.f32.mxu0 0.0
      %501 = vmatmul.mubr.f32.gmra.mrb[0].mxu0 %v434
      %v502 = vpop.f32.mrb[0].mxu0
      %v503 = vadd.f32 %v432, %v502
      %v504 = vpop.f32.mrb[0].mxu0
      %505 = vdwg.mxu0
      %v506 = vxor.u32 %v503, 2147483648
      %v507 = vmul.f32 %v506, 1.442695
      %v508 = vpow.pop %v507
      %v509 = vadd.f32 %v508, 1.0
      %v510 = vrcp.pop %v509
      %v511 = vmul.f32 1.0, %v510
      %v512 = vlaneseq
      %v513 = vshrl.u32 %v512, 7
      %v514 = vsub.s32 0, %v513
      %v515 = vrot.slane %v511, %v514
      %517 = vbcast.lane.b32.xlu0 %v515, 256
      %v518 = vpop.permute.xlu0 %517
      %v519 = vmul.f32 %v270, %v518
      %v520 = vmul.f32 %v271, %v518
      %521 = vst [vmem:[%s268] sm:$0xff] %v519
      %522 = vst [vmem:[%s268 + $0x8] sm:$0xff] %v520
      %p523 = scmp.lt.s32.totalorder %s17, 1
      %s524 = scalar_select %p523, %s17, 1
      %s525 = smul.addr %s524, 2
      %s526 = smul.addr %s525, 8
      %s527 = scalar_lea.vmem %s6, %s526
      // Predicated region
      $region45: #{attention_forward.1} parent=43 // pred_check
        %p528 = pneg %p171
      $region46: #{attention_forward.1} parent=43 // pred_check_branch
        %530 = sbr.rel (%p528) target = $region48
      $region47: #{attention_forward.1} parent=43 // pred_region
        _
      $region48: #{attention_forward.1} parent=43 // pred_fallthru
        _
    $region44: #{attention_forward.1} parent=5 // pred_fallthru
      _
    %p531 = scmp.le.s32.totalorder 2, %s12
    // Predicated region
    $region49: #{attention_forward.1} parent=5 // pred_check
      %p532 = pneg %p531
    $region50: #{attention_forward.1} parent=5 // pred_check_branch
      %534 = sbr.rel (%p532) target = $region52
    $region51: #{attention_forward.1} parent=5 // pred_region
      %s535 = ssub.s32 %s12, 2
      // Predicated region
      $region53: #{attention_forward.1} parent=51 // pred_check
        %p536 = pneg %p177
      $region54: #{attention_forward.1} parent=51 // pred_check_branch
        %538 = sbr.rel (%p536) target = $region56
      $region55: #{attention_forward.1} parent=51 // pred_region
        %p539 = scmp.lt.s32.totalorder %s18, 1
        %s540 = scalar_select %p539, %s18, 1
        %s541 = smul.addr %s540, 2
        %s542 = smul.addr %s541, 8
        %s543 = scalar_lea.vmem %s6, %s542
      $region56: #{attention_forward.1} parent=51 // pred_fallthru
        _
    $region52: #{attention_forward.1} parent=5 // pred_fallthru
      _
  $region6: #{attention_forward.1} parent=0 // loop_footer
    %s16 = sadd.s32 1, %s12
  $region7: #{attention_forward.1} parent=0 // loop_footer_branch
    %11 = sbr.rel target = $region3
  $region8: #{attention_forward.1} parent=0 // loop_exit
    _

</llo_original>
